<compile_context>
chip_gen: v6e
topology: v6e:2x2x1
jax: 0.10.0
libtpu: 0.0.40
codegen_flags: <defaults>
</compile_context>

<pallas_src>
import jax
import jax.numpy as jnp
from jax.experimental import pallas as pl
from jax.experimental.pallas import tpu as pltpu

_LANES = 128


def _adapter_kernel(feat_ref, w_ref, b_ref, out_ref):
    """1x1 conv on one (C_in, hw_tile) slab: out = W @ x + b (f32 MXU accum)."""
    y = jnp.dot(w_ref[...], feat_ref[...], preferred_element_type=jnp.float32)
    out_ref[...] = (y + b_ref[...].astype(jnp.float32)).astype(out_ref.dtype)


def _adapter_kernel_prefetch(idx_ref, feat_ref, w_ref, b_ref, out_ref):
    # Scalar-prefetched slice indices are consumed only by the index_maps.
    del idx_ref
    _adapter_kernel(feat_ref, w_ref, b_ref, out_ref)


def _byte_budget_lanes(c_in, c_out, in_itemsize, out_itemsize,
                       target_block_bytes=2 * 1024 * 1024):
    """Max lanes so the larger of the in/out VMEM block is ~target_block_bytes."""
    per_lane = max(c_in * in_itemsize, c_out * out_itemsize, 1)
    lanes = (target_block_bytes // per_lane) // _LANES * _LANES
    return max(_LANES, int(lanes))


def _pick_hw_tile(hw, max_lanes):
    """Largest multiple-of-128 divisor of hw that is <= max_lanes."""
    # TODO(synk): if hw = 128 * prime this degrades to 128-lane tiles (~29% of
    # HBM roofline); element-offset (pl.ds) indexing on the merged axis would
    # lift that but needs masked boundary handling.
    best = _LANES
    t = _LANES
    cap = min(hw, max_lanes)
    while t <= cap:
        if hw % t == 0:
            best = t
        t += _LANES
    return best


def slice_extractor_forward(features_3d, adapter_weight, adapter_bias,
                            slice_dim=2, slice_indices=None):
    """JAX/Pallas equivalent of SliceExtractor.forward.

    `features_3d` is the output of the user's `unter_3d` backbone (NCDHW).
    """
    if slice_dim != 2:
        raise NotImplementedError("Original module only handles slice_dim == 2.")

    B, C, D, H, W = features_3d.shape
    w2 = jnp.asarray(adapter_weight)
    w2 = w2.reshape(w2.shape[0], C)                 # (C_out, C_in); drops 1x1 taps
    C_out = w2.shape[0]
    b2 = jnp.asarray(adapter_bias).reshape(C_out, 1)

    if slice_indices is None:
        idx = jnp.full((B,), D // 2, dtype=jnp.int32)
    else:
        idx = jnp.asarray(slice_indices, dtype=jnp.int32)
        if idx.ndim == 0:
            idx = jnp.full((B,), idx, dtype=jnp.int32)
    idx = jnp.clip(idx, 0, D - 1)                   # Pallas does not bounds-check

    HW = H * W
    out_dtype = jnp.result_type(features_3d.dtype, w2.dtype)
    in_itemsize = jnp.dtype(features_3d.dtype).itemsize
    out_itemsize = jnp.dtype(out_dtype).itemsize
    max_lanes = _byte_budget_lanes(C, C_out, in_itemsize, out_itemsize)

    def _vmem_limit(hw_tile):
        # ~2x(in block) + 2x(out block) + weights/bias + slack; never below the
        # 32 MiB scoped default (safe on v7x's 64 MiB physical VMEM).
        est = (2 * C * hw_tile * in_itemsize
               + 2 * C_out * hw_tile * out_itemsize
               + C_out * C * jnp.dtype(w2.dtype).itemsize
               + C_out * jnp.dtype(b2.dtype).itemsize
               + (4 << 20))
        return int(max(32 << 20, est))

    if HW % _LANES == 0:
        # Fast path: merge (D, H, W) -> D*HW (free contiguous reshape) and let
        # the scalar-prefetch index_map pick the depth slice directly.
        hw_tile = _pick_hw_tile(HW, max_lanes)
        hw_blocks = HW // hw_tile
        # Guarantee >= 2 grid blocks so both v7x TensorCores get work.
        if B * hw_blocks < 2 and HW >= 2 * _LANES and (HW // 2) % _LANES == 0:
            hw_tile = HW // 2
            hw_blocks = 2
        feat = features_3d.reshape(B, C, D * HW)

        grid_spec = pltpu.PrefetchScalarGridSpec(
            num_scalar_prefetch=1,
            grid=(B, hw_blocks),
            in_specs=[
                # Block index along the merged D*HW axis:
                #   slice_idx[b] * hw_blocks + j  ->  elems [d*HW + j*hw_tile, ...)
                pl.BlockSpec(
                    (None, C, hw_tile),
                    lambda b, j, idx_ref: (b, 0, idx_ref[b] * hw_blocks + j)),
                pl.BlockSpec((C_out, C), lambda b, j, idx_ref: (0, 0)),
                pl.BlockSpec((C_out, 1), lambda b, j, idx_ref: (0, 0)),
            ],
            out_specs=pl.BlockSpec((None, C_out, hw_tile),
                                   lambda b, j, idx_ref: (b, 0, j)),
        )
        out = pl.pallas_call(
            _adapter_kernel_prefetch,
            out_shape=jax.ShapeDtypeStruct((B, C_out, HW), out_dtype),
            grid_spec=grid_spec,
            compiler_params=pltpu.CompilerParams(
                dimension_semantics=("parallel", "parallel"),
                vmem_limit_bytes=_vmem_limit(hw_tile)),
        )(idx, feat, w2, b2)
    else:
        # Slow path: H*W not 128-aligned, so the merged-axis gather can't keep
        # 128-aligned blocks.  Gather the B depth slices with XLA (tiny), then
        # run the same adapter kernel over HW tiles (cdiv grid => ragged last
        # tile is padded/masked automatically), so VMEM stays bounded.
        # TODO(synk): this costs one extra HBM round trip for the gathered
        # (B, C, HW) tensor; a direct 5D BlockSpec read would remove it but
        # needs a rank-3 in-kernel contraction.
        gathered = jax.vmap(
            lambda f, i: jax.lax.dynamic_index_in_dim(f, i, axis=1,
                                                      keepdims=False)
        )(features_3d, idx)                          # (B, C, H, W)
        gathered = gathered.reshape(B, C, HW)

        if HW <= max_lanes or HW < _LANES:
            hw_tile = HW                             # full dim -> always legal
        else:
            hw_tile = min(max_lanes, (HW // _LANES) * _LANES)
        hw_blocks = pl.cdiv(HW, hw_tile)

        grid_spec = pltpu.PrefetchScalarGridSpec(
            num_scalar_prefetch=0,
            grid=(B, hw_blocks),
            in_specs=[
                pl.BlockSpec((None, C, hw_tile), lambda b, j: (b, 0, j)),
                pl.BlockSpec((C_out, C), lambda b, j: (0, 0)),
                pl.BlockSpec((C_out, 1), lambda b, j: (0, 0)),
            ],
            out_specs=pl.BlockSpec((None, C_out, hw_tile),
                                   lambda b, j: (b, 0, j)),
        )
        out = pl.pallas_call(
            _adapter_kernel,
            out_shape=jax.ShapeDtypeStruct((B, C_out, HW), out_dtype),
            grid_spec=grid_spec,
            compiler_params=pltpu.CompilerParams(
                dimension_semantics=("parallel", "parallel"),
                vmem_limit_bytes=_vmem_limit(hw_tile)),
        )(gathered, w2, b2)

    return out.reshape(B, C_out, H, W)


def _reference_forward(features_3d, adapter_weight, adapter_bias,
                       slice_dim=2, slice_indices=None):
    """Pure-JAX reference mirroring the PyTorch module."""
    assert slice_dim == 2
    B, C, D, H, W = features_3d.shape
    w2 = jnp.asarray(adapter_weight).reshape(adapter_weight.shape[0], C)
    if slice_indices is None:
        idx = [D // 2] * B
    elif isinstance(slice_indices, (list, tuple)):
        idx = list(slice_indices)
    else:
        idx = [int(slice_indices)] * B
    slices = jnp.stack([features_3d[b, :, idx[b], :, :] for b in range(B)],
                       axis=0)                       # (B, C, H, W)
    y = jnp.einsum('oc,bchw->bohw', w2, slices,
                   precision=jax.lax.Precision.HIGHEST)
    return y + jnp.asarray(adapter_bias)[None, :, None, None]


if __name__ == "__main__":
    key = jax.random.PRNGKey(0)
    k1, k2, k3, k4 = jax.random.split(key, 4)

    # Small shapes consistent with the module:
    #   features_3d: (batch=2, channels=32, depth=8, H=16, W=16)  (NCDHW)
    #   adapter: Conv2d(32, 32, kernel_size=1)
    B, C, D, H, W = 2, 32, 8, 16, 16
    x_3d = jax.random.normal(k1, (B, C, D, H, W), dtype=jnp.float32)
    # TODO(synk): `unter_3d` is an arbitrary user-supplied 3D backbone with no
    # fixed definition; treated as identity here (apply it before calling
    # slice_extractor_forward in real use).
    features_3d = x_3d

    adapter_weight = 0.05 * jax.random.normal(k2, (C, C, 1, 1), dtype=jnp.float32)
    adapter_bias = 0.1 * jax.random.normal(k3, (C,), dtype=jnp.float32)

    # Default path: middle depth slice for every batch element (fast path).
    out = jax.block_until_ready(
        slice_extractor_forward(features_3d, adapter_weight, adapter_bias))
    ref = _reference_forward(features_3d, adapter_weight, adapter_bias)
    assert out.shape == (B, C, H, W), out.shape
    assert jnp.allclose(out, ref, rtol=2e-2, atol=2e-2), (
        float(jnp.max(jnp.abs(out - ref))))

    # Explicit per-batch slice indices (exercises the data-dependent gather).
    idxs = [1, 6]
    out2 = jax.block_until_ready(
        slice_extractor_forward(features_3d, adapter_weight, adapter_bias,
                                slice_indices=idxs))
    ref2 = _reference_forward(features_3d, adapter_weight, adapter_bias,
                              slice_indices=idxs)
    assert jnp.allclose(out2, ref2, rtol=2e-2, atol=2e-2), (
        float(jnp.max(jnp.abs(out2 - ref2))))

    # Non-128-aligned H*W exercises the tiled slow path.
    H2 = W2 = 12
    x_small = jax.random.normal(k4, (B, C, D, H2, W2), dtype=jnp.float32)
    out3 = jax.block_until_ready(
        slice_extractor_forward(x_small, adapter_weight, adapter_bias,
                                slice_indices=[3, 0]))
    ref3 = _reference_forward(x_small, adapter_weight, adapter_bias,
                              slice_indices=[3, 0])
    assert out3.shape == (B, C, H2, W2), out3.shape
    assert jnp.allclose(out3, ref3, rtol=2e-2, atol=2e-2), (
        float(jnp.max(jnp.abs(out3 - ref3))))

    print("KERNEL_OK")
</pallas_src>

<mosaic_0001>
module attributes {stable_mosaic.version = 11 : i64} {
  func.func @_adapter_kernel_prefetch(%arg0: i32, %arg1: i32, %arg2: memref<2xi32, #tpu.memory_space<smem>>, %arg3: memref<1x32x256xf32, #tpu.memory_space<vmem>>, %arg4: memref<32x32xf32, #tpu.memory_space<vmem>>, %arg5: memref<32x1xf32, #tpu.memory_space<vmem>>, %arg6: memref<1x32x256xf32, #tpu.memory_space<vmem>>) attributes {dimension_semantics = [#tpu.dimension_semantics<parallel>, #tpu.dimension_semantics<parallel>], iteration_bounds = array<i64: 2, 1>, scalar_prefetch = 1 : i64, scratch_operands = 0 : i64, tpu.core_type = #tpu.core_type<tc>, window_params = [{transform_indices = @transform_0, window_bounds = array<i64: 1, 32, 256>}, {pipeline_mode = #tpu.pipeline_mode<synchronous>, transform_indices = @transform_1, window_bounds = array<i64: 32, 32>}, {pipeline_mode = #tpu.pipeline_mode<synchronous>, transform_indices = @transform_2, window_bounds = array<i64: 32, 1>}, {transform_indices = @transform_3, window_bounds = array<i64: 1, 32, 256>}]} {
    %c0 = arith.constant 0 : index
    %c0_0 = arith.constant 0 : index
    %0 = vector.load %arg4[%c0, %c0_0] : memref<32x32xf32, #tpu.memory_space<vmem>>, vector<32x32xf32>
    %c0_1 = arith.constant 0 : index
    %c0_2 = arith.constant 0 : index
    %c0_3 = arith.constant 0 : index
    %1 = vector.load %arg3[%c0_1, %c0_2, %c0_3] : memref<1x32x256xf32, #tpu.memory_space<vmem>>, vector<1x32x256xf32>
    %2 = vector.shape_cast %1 : vector<1x32x256xf32> to vector<32x256xf32>
    %cst = arith.constant dense<0.000000e+00> : vector<32x256xf32>
    %3 = tpu.matmul %0, %2, %cst {dimension_numbers = #tpu.dot_dimension_numbers<[1], [0], [0], [1], [0, 0, 1, 1], [], []>} : vector<32x32xf32>, vector<32x256xf32>, vector<32x256xf32> -> vector<32x256xf32>
    %c0_4 = arith.constant 0 : index
    %c0_5 = arith.constant 0 : index
    %4 = vector.load %arg5[%c0_4, %c0_5] : memref<32x1xf32, #tpu.memory_space<vmem>>, vector<32x1xf32>
    %5 = vector.broadcast %4 : vector<32x1xf32> to vector<32x256xf32>
    %6 = arith.addf %3, %5 : vector<32x256xf32>
    %c0_6 = arith.constant 0 : index
    %c0_7 = arith.constant 0 : index
    %c0_8 = arith.constant 0 : index
    %7 = vector.load %arg6[%c0_6, %c0_7, %c0_8] : memref<1x32x256xf32, #tpu.memory_space<vmem>>, vector<1x32x256xf32>
    %8 = vector.shape_cast %7 : vector<1x32x256xf32> to vector<32x256xf32>
    %9 = vector.shape_cast %6 : vector<32x256xf32> to vector<1x32x256xf32>
    tpu.vector_store %arg6[%c0_6, %c0_7, %c0_8], %9 {strides = array<i32>} : memref<1x32x256xf32, #tpu.memory_space<vmem>>, vector<1x32x256xf32>,
    return
  }
  func.func @transform_0(%arg0: i32, %arg1: i32, %arg2: memref<2xi32, #tpu.memory_space<smem>>) -> (i32, i32, i32) {
    %0 = arith.index_cast %arg0 : i32 to index
    %1 = memref.load %arg2[%0] : memref<2xi32, #tpu.memory_space<smem>>
    %c1_i32 = arith.constant 1 : i32
    %2 = arith.muli %1, %c1_i32 : i32
    %3 = arith.addi %2, %arg1 : i32
    %c0_i32 = arith.constant 0 : i32
    %c0_i32_0 = arith.constant 0 : i32
    return %arg0, %c0_i32, %3 : i32, i32, i32
  }
  func.func @transform_1(%arg0: i32, %arg1: i32, %arg2: memref<2xi32, #tpu.memory_space<smem>>) -> (i32, i32) {
    %c0_i32 = arith.constant 0 : i32
    %c0_i32_0 = arith.constant 0 : i32
    %c0_i32_1 = arith.constant 0 : i32
    return %c0_i32, %c0_i32_0 : i32, i32
  }
  func.func @transform_2(%arg0: i32, %arg1: i32, %arg2: memref<2xi32, #tpu.memory_space<smem>>) -> (i32, i32) {
    %c0_i32 = arith.constant 0 : i32
    %c0_i32_0 = arith.constant 0 : i32
    %c0_i32_1 = arith.constant 0 : i32
    return %c0_i32, %c0_i32_0 : i32, i32
  }
  func.func @transform_3(%arg0: i32, %arg1: i32, %arg2: memref<2xi32, #tpu.memory_space<smem>>) -> (i32, i32, i32) {
    %c0_i32 = arith.constant 0 : i32
    %c0_i32_0 = arith.constant 0 : i32
    return %arg0, %c0_i32, %arg1 : i32, i32, i32
  }
}

</mosaic_0001>

<llo_original>
// kernel: tpu_custom_call.1
$region0: #{tpu_custom_call.1}
  #allocation0 [shape = 'u32[]', space=smem, size = 0x4, offset = 0x4, fixed_abs, tag = 'smem constant byte address 0x4 - core index']
  #allocation1 [shape = 'u32[144,128]{1,0:T(1,128)}', space=vmem, size = 0x12000, scoped, tag = 'internal scratch']
  #allocation2 [shape = 's32[1]{0}', space=sflag, size = 0x4, scoped, tag = 'scoped memory for tpu_custom_call.1']
  #allocation3 [shape = 'u8[512]{0}', space=smem, size = 0x200, scoped, tag = 'prefetched SMEM operand 0']
  %s0 = inlined_call_operand.vmem [shape: s32[2], index: 0, kind: input, shape index: {}]
  %s1 = inlined_call_operand.hbm [shape: f32[2,32,2048], index: 1, kind: input, shape index: {}]
  %s2 = inlined_call_operand.vmem [shape: f32[32,32], index: 2, kind: input, shape index: {}]
  %s3 = inlined_call_operand.vmem [shape: f32[32,1], index: 3, kind: input, shape index: {}]
  %s4 = inlined_call_operand.hbm [shape: f32[2,32,256], index: 4, kind: output, shape index: {}]
  %s5 = sld [smem:[#allocation0]]
  $region49: #{tpu_custom_call.1} parent=0
    _
  %s7 = ssub.s32 1, %s5
  %s8 = scalar_select 0, %s7, %s5
  %s9 = sshll.u32 %s0, 4
  %s10 = int_to_ptr.vmem [resolvable:$true] %s9
  %12 = dma.vmem_to_smem %s10, 16, [#allocation3], [#allocation2]
  %13 = dma.done [#allocation2], 16
  %14 = sfence
  $region1: #{tpu_custom_call.1} parent=0
    #allocation4 [shape = 'u8[65536]{0}', space=vmem, size = 0x10000, scoped, tag = 'input window, operand 1']
    #allocation5 [shape = 's32[2]{0}', space=sflag, size = 0x8, scoped, tag = 'scoped memory for tpu_custom_call.1']
    #allocation6 [shape = 's32[2]{0}', space=sflag, size = 0x8, scoped, tag = 'scoped memory for tpu_custom_call.1']
    #allocation7 [shape = 'u8[65536]{0}', space=vmem, size = 0x10000, scoped, tag = 'output window, operand 0']
    %15 = vsyncpa [#allocation5], 0
    %s16 = scalar_lea.sflag [#allocation5], 1
    %17 = vsyncpa %s16, 0
    %18 = vsyncpa [#allocation6], 0
    %s19 = scalar_lea.sflag [#allocation6], 1
    %20 = vsyncpa %s19, 0
    loop: start=0, step=1, limit=4
    $region2: #{tpu_custom_call.1} parent=1 // loop_pre_header
      _
    $region3: #{tpu_custom_call.1} parent=1 // loop_header
      %s22 = sphi 0, %s26
      %p23 = scmp.ge.s32.totalorder %s22, 4
      %s29 = sphi 0, %s41
      %s30 = sphi 0, %s37
      %s31 = sphi 0, %s29
      %s32 = sphi 0, %s30
      %s33 = sphi 0, %s31
      %s34 = sphi 0, %s32
      %s50 = sphi 0, %s52
      %s53 = sphi 0, %s50
      %s54 = sphi 0, %s53
      %s70 = sphi 0, %s54
      %s74 = sphi 0, %s74
      %s76 = sphi 0, %s74
      %s77 = sphi 0, %s76
      %s91 = sphi 0, %s77
      %s95 = sphi 0, %s95
      %s97 = sphi 0, %s95
      %s98 = sphi 0, %s97
      %s112 = sphi 0, %s98
      %s120 = sphi 0, %s122
      %s123 = sphi 0, %s120
      %s124 = sphi 0, %s123
      %s140 = sphi 0, %s124
    $region4: #{tpu_custom_call.1} parent=1 // loop_header_branch
      %25 = sbr.rel (%p23) target = $region8
    $region5: #{tpu_custom_call.1} parent=1 // loop_body
      %s27 = ssub.s32 %s22, 1
      %s28 = ssub.s32 %s22, 2
      %s35 = sadd.s32 1, %s30
      %p36 = scmp.ge.s32.totalorder %s35, 1
      %s37 = scalar_select %p36, 0, %s35
      %s38 = sadd.s32 1, %s29
      %s39 = scalar_select %p36, %s38, %s29
      %p40 = scmp.ge.s32.totalorder %s39, 2
      %s41 = scalar_select %p40, 0, %s39
      %s42 = sld [smem:[#allocation3 + %s29]]
      %s43 = sadd.s32 %s42, %s30
      %s44 = sld [smem:[#allocation3 + %s41]]
      %s45 = sadd.s32 %s44, %s37
      %s46 = ssub.s32 %s29, %s41
      %s47 = ssub.s32 %s43, %s45
      %s48 = sor.u32 %s46, %s47
      %p49 = scmp.eq.s32.totalorder %s48, 0
      %s51 = sadd.s32 %s50, 1
      %s52 = scalar_select %p49, %s50, %s51
      %p55 = pneg %p49
      %p56 = scmp.eq.s32.totalorder %s22, 1
      %p57 = por %p55, %p56
      %p58 = scmp.ne.s32.totalorder %s50, %s53
      %p59 = scmp.eq.s32.totalorder %s22, 0
      %p60 = por %p58, %p59
      %p61 = scmp.ne.s32.totalorder %s50, %s53
      %p62 = scmp.eq.s32.totalorder %s27, 1
      %p63 = por %p61, %p62
      %p64 = scmp.ne.s32.totalorder %s53, %s54
      %p65 = scmp.eq.s32.totalorder %s27, 0
      %p66 = por %p64, %p65
      %p67 = scmp.ne.s32.totalorder %s53, %s54
      %p68 = scmp.eq.s32.totalorder %s28, 1
      %p69 = por %p67, %p68
      %p71 = scmp.ne.s32.totalorder %s54, %s70
      %p72 = scmp.eq.s32.totalorder %s28, 0
      %p73 = por %p71, %p72
      %s75 = sadd.s32 %s74, 1
      %p78 = scmp.eq.s32.totalorder %s22, 1
      %p79 = scmp.ne.s32.totalorder %s74, %s76
      %p80 = scmp.eq.s32.totalorder %s22, 0
      %p81 = por %p79, %p80
      %p82 = scmp.ne.s32.totalorder %s74, %s76
      %p83 = scmp.eq.s32.totalorder %s27, 1
      %p84 = por %p82, %p83
      %p85 = scmp.ne.s32.totalorder %s76, %s77
      %p86 = scmp.eq.s32.totalorder %s27, 0
      %p87 = por %p85, %p86
      %p88 = scmp.ne.s32.totalorder %s76, %s77
      %p89 = scmp.eq.s32.totalorder %s28, 1
      %p90 = por %p88, %p89
      %p92 = scmp.ne.s32.totalorder %s77, %s91
      %p93 = scmp.eq.s32.totalorder %s28, 0
      %p94 = por %p92, %p93
      %s96 = sadd.s32 %s95, 1
      %p99 = scmp.eq.s32.totalorder %s22, 1
      %p100 = scmp.ne.s32.totalorder %s95, %s97
      %p101 = scmp.eq.s32.totalorder %s22, 0
      %p102 = por %p100, %p101
      %p103 = scmp.ne.s32.totalorder %s95, %s97
      %p104 = scmp.eq.s32.totalorder %s27, 1
      %p105 = por %p103, %p104
      %p106 = scmp.ne.s32.totalorder %s97, %s98
      %p107 = scmp.eq.s32.totalorder %s27, 0
      %p108 = por %p106, %p107
      %p109 = scmp.ne.s32.totalorder %s97, %s98
      %p110 = scmp.eq.s32.totalorder %s28, 1
      %p111 = por %p109, %p110
      %p113 = scmp.ne.s32.totalorder %s98, %s112
      %p114 = scmp.eq.s32.totalorder %s28, 0
      %p115 = por %p113, %p114
      %s116 = ssub.s32 %s29, %s41
      %s117 = ssub.s32 %s30, %s37
      %s118 = sor.u32 %s116, %s117
      %p119 = scmp.eq.s32.totalorder %s118, 0
      %s121 = sadd.s32 %s120, 1
      %s122 = scalar_select %p119, %s120, %s121
      %p125 = pneg %p119
      %p126 = scmp.eq.s32.totalorder %s22, 1
      %p127 = por %p125, %p126
      %p128 = scmp.ne.s32.totalorder %s120, %s123
      %p129 = scmp.eq.s32.totalorder %s22, 0
      %p130 = por %p128, %p129
      %p131 = scmp.ne.s32.totalorder %s120, %s123
      %p132 = scmp.eq.s32.totalorder %s27, 1
      %p133 = por %p131, %p132
      %p134 = scmp.ne.s32.totalorder %s123, %s124
      %p135 = scmp.eq.s32.totalorder %s27, 0
      %p136 = por %p134, %p135
      %p137 = scmp.ne.s32.totalorder %s123, %s124
      %p138 = scmp.eq.s32.totalorder %s28, 1
      %p139 = por %p137, %p138
      %p141 = scmp.ne.s32.totalorder %s124, %s140
      %p142 = scmp.eq.s32.totalorder %s28, 0
      %p143 = por %p141, %p142
      %p144 = scmp.le.s32.totalorder 1, %s22
      %p145 = scmp.lt.s32.totalorder %s22, 3
      %p146 = pnand %p144, %p145
      %p147 = pneg %p146
      // Predicated region
      $region9: #{tpu_custom_call.1} parent=5 // pred_check
        _
      $region10: #{tpu_custom_call.1} parent=5 // pred_check_branch
        %149 = sbr.rel (%p146) target = $region12
      $region11: #{tpu_custom_call.1} parent=5 // pred_region
        %s150 = ssub.s32 %s22, 1
        // Predicated region
        $region13: #{tpu_custom_call.1} parent=11 // pred_check
          %p151 = pneg %p87
        $region14: #{tpu_custom_call.1} parent=11 // pred_check_branch
          %153 = sbr.rel (%p151) target = $region16
        $region15: #{tpu_custom_call.1} parent=11 // pred_region
          _
        $region16: #{tpu_custom_call.1} parent=11 // pred_fallthru
          _
        // Predicated region
        $region17: #{tpu_custom_call.1} parent=11 // pred_check
          %p154 = pneg %p108
        $region18: #{tpu_custom_call.1} parent=11 // pred_check_branch
          %156 = sbr.rel (%p154) target = $region20
        $region19: #{tpu_custom_call.1} parent=11 // pred_region
          _
        $region20: #{tpu_custom_call.1} parent=11 // pred_fallthru
          _
      $region12: #{tpu_custom_call.1} parent=5 // pred_fallthru
        _
      %p157 = scmp.lt.s32.totalorder %s22, 2
      // Predicated region
      $region21: #{tpu_custom_call.1} parent=5 // pred_check
        %p158 = pneg %p157
      $region22: #{tpu_custom_call.1} parent=5 // pred_check_branch
        %160 = sbr.rel (%p158) target = $region24
      $region23: #{tpu_custom_call.1} parent=5 // pred_region
        // Predicated region
        $region25: #{tpu_custom_call.1} parent=23 // pred_check
          %p161 = pneg %p60
        $region26: #{tpu_custom_call.1} parent=23 // pred_check_branch
          %163 = sbr.rel (%p161) target = $region28
        $region27: #{tpu_custom_call.1} parent=23 // pred_region
          %s164 = sand.u32 %s50, 1
          %s165 = scalar_lea.sflag [#allocation5], %s164
          %s166 = sand.u32 %s50, 1
          %s167 = smul.addr %s166, 64
          %s168 = scalar_lea.vmem [#allocation4], %s167
          %s169 = sld [smem:[#allocation3 + %s29]]
          %s170 = sadd.s32 %s169, %s30
          %s171 = smul.u32 2, %s170
          %s173 = ssub.s32 1024, 1024
          %174 = vsyncadd %s165, %s173
          %s175 = smul.addr %s29, 64
          %s176 = sadd.s32 %s171, %s175
          %s177 = smul.addr %s176, 128
          %s178 = scalar_lea.hbm %s1, %s177
          %s179 = sshll.u32 %s168, 4
          %s180 = int_to_ptr.vmem [resolvable:$true] %s179
          %185 = dma.hbm_to_vmem [thread:$0]  %s178, 1024, %s180, %s165, 2048, 256, 16
        $region28: #{tpu_custom_call.1} parent=23 // pred_fallthru
          _
      $region24: #{tpu_custom_call.1} parent=5 // pred_fallthru
        _
      %p186 = scmp.le.s32.totalorder 1, %s22
      %p187 = scmp.lt.s32.totalorder %s22, 3
      %p188 = pnand %p186, %p187
      %p189 = pneg %p188
      // Predicated region
      $region29: #{tpu_custom_call.1} parent=5 // pred_check
        _
      $region30: #{tpu_custom_call.1} parent=5 // pred_check_branch
        %191 = sbr.rel (%p188) target = $region32
      $region31: #{tpu_custom_call.1} parent=5 // pred_region
        %s192 = ssub.s32 %s22, 1
        %s193 = sand.u32 %s53, 1
        %s194 = scalar_lea.sflag [#allocation5], %s193
        %s195 = sand.u32 %s53, 1
        %s196 = smul.addr %s195, 64
        %s197 = scalar_lea.vmem [#allocation4], %s196
        // Predicated region
        $region33: #{tpu_custom_call.1} parent=31 // pred_check
          %p198 = pneg %p66
        $region34: #{tpu_custom_call.1} parent=31 // pred_check_branch
          %200 = sbr.rel (%p198) target = $region36
        $region35: #{tpu_custom_call.1} parent=31 // pred_region
          %201 = dma.done %s194, 1024
        $region36: #{tpu_custom_call.1} parent=31 // pred_fallthru
          _
        %s202 = sand.u32 %s53, 1
        %s203 = scalar_lea.sflag [#allocation5], %s202
        %s204 = sand.u32 %s53, 1
        %s205 = smul.addr %s204, 64
        %s206 = scalar_lea.vmem [#allocation4], %s205
        %p207 = pneg %p66
        %p208 = pneg %p63
        %p209 = pneg %p87
        %p210 = pneg %p84
        %p211 = pneg %p108
        %p212 = pneg %p105
        %p213 = pneg %p136
        %p214 = pneg %p133
        %s215 = sand.u32 %s123, 1
        %s216 = scalar_lea.sflag [#allocation6], %s215
        %s217 = sand.u32 %s123, 1
        %s218 = smul.addr %s217, 64
        %s219 = scalar_lea.vmem [#allocation7], %s218
        %s220 = sld [smem:[#allocation3 + %s31]]
        %s221 = sadd.s32 %s220, %s32
        %s222 = smul.u32 2, %s221
        %s223 = smul.u32 2, %s32
        %v224 = vld [vmem:[%s2] sm:$0xff]
        %v225 = vld [vmem:[%s2 + $0x8] sm:$0xff]
        %v226 = vld [vmem:[%s2 + $0x10] sm:$0xff]
        %v227 = vld [vmem:[%s2 + $0x18] sm:$0xff]
        %v228 = vld [vmem:[%s197] sm:$0xff]
        %v229 = vld [vmem:[%s197 + $0x8] sm:$0xff]
        %v230 = vld [vmem:[%s197 + $0x10] sm:$0xff]
        %v231 = vld [vmem:[%s197 + $0x18] sm:$0xff]
        %v232 = vld [vmem:[%s197 + $0x20] sm:$0xff]
        %v233 = vld [vmem:[%s197 + $0x28] sm:$0xff]
        %v234 = vld [vmem:[%s197 + $0x30] sm:$0xff]
        %v235 = vld [vmem:[%s197 + $0x38] sm:$0xff]
        %v236 = vld [vmem:[%s3] sm:$0xff]
        %v237 = vld [vmem:[%s3 + $0x8] sm:$0xff]
        %v238 = vld [vmem:[%s3 + $0x10] sm:$0xff]
        %v239 = vld [vmem:[%s3 + $0x18] sm:$0xff]
        %241 = vset.pattern.permute.xlu0 0
        %242 = vperm.xlu0 %241, %v236
        %v243 = vpop.permute.xlu0 %242
        %246 = vset.pattern.permute.xlu0 0
        %247 = vperm.xlu0 %246, %v237
        %v248 = vpop.permute.xlu0 %247
        %251 = vset.pattern.permute.xlu0 0
        %252 = vperm.xlu0 %251, %v238
        %v253 = vpop.permute.xlu0 %252
        %256 = vset.pattern.permute.xlu0 0
        %257 = vperm.xlu0 %256, %v239
        %v258 = vpop.permute.xlu0 %257
        %vm260 = vcmask 261120
        %v262 = vsel %vm260, %v224, 0
        %v265 = vsel %vm260, %v225, 0
        %v268 = vsel %vm260, %v226, 0
        %v271 = vsel %vm260, %v227, 0
        %273 = vmatprep.subr.mxu0 0.0
        %274 = vmatpush1.msra.mxu0 0.0
        %275 = vmatprep.subr.mxu0 0.0
        %276 = vmatpush1.msra.mxu0 0.0
        %277 = vmatprep.subr.mxu0 0.0
        %278 = vmatpush1.msra.mxu0 0.0
        %279 = vmatprep.subr.mxu0 0.0
        %280 = vmatpush1.msra.mxu0 0.0
        %281 = vmatprep.subr.mxu0 0.0
        %282 = vmatpush1.msra.mxu0 0.0
        %283 = vmatprep.subr.mxu0 0.0
        %284 = vmatpush1.msra.mxu0 0.0
        %285 = vmatprep.subr.mxu0 0.0
        %286 = vmatpush1.msra.mxu0 0.0
        %287 = vmatprep.subr.mxu0 0.0
        %288 = vmatpush1.msra.mxu0 0.0
        %289 = vmatprep.subr.mxu0 0.0
        %290 = vmatpush1.msra.mxu0 0.0
        %291 = vmatprep.subr.mxu0 0.0
        %292 = vmatpush1.msra.mxu0 0.0
        %293 = vmatprep.subr.mxu0 0.0
        %294 = vmatpush1.msra.mxu0 0.0
        %295 = vmatprep.subr.mxu0 0.0
        %296 = vmatpush1.msra.mxu0 0.0
        %297 = vmatprep.subr.mxu0 %v235
        %298 = vmatpush1.msra.mxu0 %v234
        %299 = vmatprep.subr.mxu0 %v233
        %300 = vmatpush1.msra.mxu0 %v232
        %301 = vmatprep.subr.mxu0 %v231
        %302 = vmatpush1.msra.mxu0 %v230
        %303 = vmatprep.subr.mxu0 %v229
        %304 = vmatpush1.msra.mxu0 %v228
        %305 = vmatprep.subr.mxu0 0.0
        %306 = vmatpush2.msra.mxu0 0.0
        %307 = vmatprep.subr.mxu0 0.0
        %308 = vmatpush2.msra.mxu0 0.0
        %309 = vmatprep.subr.mxu0 0.0
        %310 = vmatpush2.msra.mxu0 0.0
        %311 = vmatprep.subr.mxu0 0.0
        %312 = vmatpush2.msra.mxu0 0.0
        %313 = vmatprep.subr.mxu0 0.0
        %314 = vmatpush2.msra.mxu0 0.0
        %315 = vmatprep.subr.mxu0 0.0
        %316 = vmatpush2.msra.mxu0 0.0
        %317 = vmatprep.subr.mxu0 0.0
        %318 = vmatpush2.msra.mxu0 0.0
        %319 = vmatprep.subr.mxu0 0.0
        %320 = vmatpush2.msra.mxu0 0.0
        %321 = vmatprep.subr.mxu0 0.0
        %322 = vmatpush2.msra.mxu0 0.0
        %323 = vmatprep.subr.mxu0 0.0
        %324 = vmatpush2.msra.mxu0 0.0
        %325 = vmatprep.subr.mxu0 0.0
        %326 = vmatpush2.msra.mxu0 0.0
        %327 = vmatprep.subr.mxu0 0.0
        %328 = vmatpush2.msra.mxu0 0.0
        %329 = vmatprep.subr.mxu0 0.0
        %330 = vmatpush2.msra.mxu0 0.0
        %331 = vmatprep.subr.mxu0 0.0
        %332 = vmatpush2.msra.mxu0 0.0
        %333 = vmatprep.subr.mxu0 0.0
        %334 = vmatpush2.msra.mxu0 0.0
        %335 = vmatprep.subr.mxu0 0.0
        %336 = vmatpush2.msra.mxu0 0.0
        %337 = vmatprep.mubr.f32.mxu0 0.0
        %338 = vmatmul.mubr.f32.gmra.mxu0 %v262
        %v339 = vpop.f32.mrf.mxu0
        %v340 = vadd.f32 %v243, %v339
        %v341 = vpop.f32.mrf.mxu0
        %v342 = vadd.f32 %v243, %v341
        %343 = vmatprep.mubr.f32.mxu0 0.0
        %344 = vmatmul.mubr.f32.gmra.mxu0 %v265
        %v345 = vpop.f32.mrf.mxu0
        %v346 = vadd.f32 %v248, %v345
        %v347 = vpop.f32.mrf.mxu0
        %v348 = vadd.f32 %v248, %v347
        %349 = vmatprep.mubr.f32.mxu0 0.0
        %350 = vmatmul.mubr.f32.gmra.mxu0 %v268
        %v351 = vpop.f32.mrf.mxu0
        %v352 = vadd.f32 %v253, %v351
        %v353 = vpop.f32.mrf.mxu0
        %v354 = vadd.f32 %v253, %v353
        %355 = vmatprep.mubr.f32.mxu0 0.0
        %356 = vmatmul.mubr.f32.gmra.mxu0 %v271
        %v357 = vpop.f32.mrf.mxu0
        %v358 = vadd.f32 %v258, %v357
        %v359 = vpop.f32.mrf.mxu0
        %v360 = vadd.f32 %v258, %v359
        %361 = vdwg.mxu0
        %362 = vst [vmem:[%s219] sm:$0xff] %v340
        %363 = vst [vmem:[%s219 + $0x8] sm:$0xff] %v342
        %364 = vst [vmem:[%s219 + $0x10] sm:$0xff] %v346
        %365 = vst [vmem:[%s219 + $0x18] sm:$0xff] %v348
        %366 = vst [vmem:[%s219 + $0x20] sm:$0xff] %v352
        %367 = vst [vmem:[%s219 + $0x28] sm:$0xff] %v354
        %368 = vst [vmem:[%s219 + $0x30] sm:$0xff] %v358
        %369 = vst [vmem:[%s219 + $0x38] sm:$0xff] %v360
        %s370 = sand.u32 %s123, 1
        %s371 = scalar_lea.sflag [#allocation6], %s370
        %s372 = sand.u32 %s123, 1
        %s373 = smul.addr %s372, 64
        %s374 = scalar_lea.vmem [#allocation7], %s373
        // Predicated region
        $region37: #{tpu_custom_call.1} parent=31 // pred_check
          %p375 = pneg %p133
        $region38: #{tpu_custom_call.1} parent=31 // pred_check_branch
          %377 = sbr.rel (%p375) target = $region40
        $region39: #{tpu_custom_call.1} parent=31 // pred_region
          %s378 = smul.u32 2, %s32
          %s380 = ssub.s32 1024, 1024
          %381 = vsyncadd %s371, %s380
          %s382 = smul.addr %s31, 8
          %s383 = sadd.s32 %s378, %s382
          %s384 = smul.addr %s383, 128
          %s385 = scalar_lea.hbm %s4, %s384
          %s386 = sshll.u32 %s374, 4
          %s387 = int_to_ptr.vmem [resolvable:$true] %s386
          %392 = dma.vmem_to_hbm [thread:$0]  %s387, 1024, %s385, %s371, 256, 256, 16
        $region40: #{tpu_custom_call.1} parent=31 // pred_fallthru
          _
      $region32: #{tpu_custom_call.1} parent=5 // pred_fallthru
        _
      %p393 = scmp.le.s32.totalorder 2, %s22
      // Predicated region
      $region41: #{tpu_custom_call.1} parent=5 // pred_check
        %p394 = pneg %p393
      $region42: #{tpu_custom_call.1} parent=5 // pred_check_branch
        %396 = sbr.rel (%p394) target = $region44
      $region43: #{tpu_custom_call.1} parent=5 // pred_region
        %s397 = ssub.s32 %s22, 2
        // Predicated region
        $region45: #{tpu_custom_call.1} parent=43 // pred_check
          %p398 = pneg %p139
        $region46: #{tpu_custom_call.1} parent=43 // pred_check_branch
          %400 = sbr.rel (%p398) target = $region48
        $region47: #{tpu_custom_call.1} parent=43 // pred_region
          %s401 = sand.u32 %s124, 1
          %s402 = scalar_lea.sflag [#allocation6], %s401
          %s403 = sand.u32 %s124, 1
          %s404 = smul.addr %s403, 64
          %s405 = scalar_lea.vmem [#allocation7], %s404
          %406 = dma.done %s402, 1024
        $region48: #{tpu_custom_call.1} parent=43 // pred_fallthru
          _
      $region44: #{tpu_custom_call.1} parent=5 // pred_fallthru
        _
    $region6: #{tpu_custom_call.1} parent=1 // loop_footer
      %s26 = sadd.s32 1, %s22
    $region7: #{tpu_custom_call.1} parent=1 // loop_footer_branch
      %21 = sbr.rel target = $region3
    $region8: #{tpu_custom_call.1} parent=1 // loop_exit
      _
    %407 = vsyncpa [#allocation5], 1
    %s408 = scalar_lea.sflag [#allocation5], 1
    %409 = vsyncpa %s408, 1
    %410 = vsyncpa [#allocation6], 1
    %s411 = scalar_lea.sflag [#allocation6], 1
    %412 = vsyncpa %s411, 1

</llo_original>
